<compile_context>
chip_gen: v5e
topology: v5e:2x2
jax: 0.10.0
libtpu: 0.0.40
codegen_flags: <defaults>
</compile_context>

<pallas_src>
import math
import functools

import numpy as np
import jax
import jax.numpy as jnp
from jax.experimental import pallas as pl
from jax.experimental.pallas import tpu as pltpu


def _round_up(x, m):
    return (x + m - 1) // m * m


def _pe_interleaved_kernel(pos_lane_ref, div_lane_ref, out_ref, *,
                           tile_rows, pos_per_row):
    """Write one (tile_rows, W) tile of the INTERLEAVED sinusoidal table.

    Lane l of work-row r holds pe[p, d] with
        p = r * pos_per_row + pos_lane[l]      (pos_lane[l] = l // d_model)
        d = l % d_model
        angle = p * div_term[d // 2]           (div_lane[l] = div_term[d // 2])
        value = sin(angle) if d is even else cos(angle)
    so `out.reshape(-1, d_model)` is a pure row-major view of the pe table.
    Both sin and cos are evaluated and selected by lane parity (d_model is
    even, so parity(l % d_model) == parity(l)): 2x EUP on this one-time build
    in exchange for emitting the final layout with no HBM round trip.
    """
    b = pl.program_id(0)
    R, W = out_ref.shape
    row = jax.lax.broadcasted_iota(jnp.int32, (R, W), 0) + b * tile_rows
    lane = jax.lax.broadcasted_iota(jnp.int32, (R, W), 1)
    # Exact integer position (fits f32 exactly for max_len < 2**24), then a
    # single f32 multiply -> bit-identical angles to the reference pos*div.
    pos = (row * pos_per_row + pos_lane_ref[...]).astype(jnp.float32)
    ang = pos * div_lane_ref[...]
    is_cos = (lane % 2) == 1
    val = jnp.where(is_cos, jnp.cos(ang), jnp.sin(ang))
    out_ref[...] = val.astype(out_ref.dtype)


_PE_TABLE_CACHE = {}


def _build_pe_table(max_len, d_model, dtype):
    """Build the (max_len, d_model) interleaved sinusoidal table with Pallas."""
    assert d_model % 2 == 0, "d_model must be even"
    div_term = np.exp(
        np.arange(0, d_model, 2, dtype=np.float32)
        * np.float32(-(math.log(10000.0) / d_model)))            # (d_model//2,)

    # Lane-dense layout: pack `ppr` consecutive positions per work row so the
    # output width W = d_model * ppr is ~512 lanes, and a multiple of 128
    # whenever possible (unmasked full-width vst's).
    target_w = 512
    if d_model >= target_w:
        ppr = 1
    else:
        step = 128 // math.gcd(d_model, 128)   # smallest ppr with (d_model*ppr) % 128 == 0
        if d_model * step <= target_w:
            ppr = (target_w // (d_model * step)) * step
        else:
            ppr = max(1, target_w // d_model)
    W = d_model * ppr

    lane = np.arange(W)
    pos_lane = (lane // d_model).astype(np.int32).reshape(1, W)
    div_lane = div_term[(lane % d_model) // 2].astype(np.float32).reshape(1, W)

    rows_needed = -(-max_len // ppr)
    rows_padded = _round_up(rows_needed, 8)
    itemsize = jnp.dtype(dtype).itemsize

    # ~2 MiB output blocks (measured store-roofline sweet spot), capped rows.
    rows_budget = max(8, ((2 * 1024 * 1024) // (W * itemsize)) // 8 * 8)
    blk_cap = min(4096, rows_budget)
    steps = max(1, -(-rows_padded // blk_cap))
    if steps == 1 and rows_padded >= 16:
        steps = 2              # keep >=2 parallel steps so v7x's 2nd TC has work
    elif steps > 1 and steps % 2 == 1:
        steps += 1             # prefer an even step count for the 2-TC split
    tile_rows = max(8, _round_up(-(-rows_needed // steps), 8))
    total_rows = _round_up(rows_needed, tile_rows)
    grid = (total_rows // tile_rows,)

    block_bytes = tile_rows * W * itemsize
    # One double-buffered output + two tiny (1, W) inputs; keep headroom.
    vmem_limit = int(min(64 * 1024 * 1024,
                         max(16 * 1024 * 1024, 4 * block_bytes + 4 * 1024 * 1024)))

    kernel = functools.partial(_pe_interleaved_kernel,
                               tile_rows=tile_rows, pos_per_row=ppr)

    lane_spec = pl.BlockSpec((1, W), lambda i: (0, 0))
    out = pl.pallas_call(
        kernel,
        out_shape=jax.ShapeDtypeStruct((total_rows, W), dtype),
        grid=grid,
        in_specs=[lane_spec, lane_spec],
        out_specs=pl.BlockSpec((tile_rows, W), lambda i: (i, 0)),
        compiler_params=pltpu.CompilerParams(
            dimension_semantics=("parallel",),
            vmem_limit_bytes=vmem_limit),
    )(jnp.asarray(pos_lane), jnp.asarray(div_lane))

    # Pure row-major view + slice: no transpose, no extra HBM round trip.
    return out.reshape(-1, d_model)[:max_len]


def _get_pe_table(max_len, d_model, dtype=jnp.float32):
    """Cached table, like the torch module's precomputed self.pe (call eagerly)."""
    key = (int(max_len), int(d_model), jnp.dtype(dtype).name)
    if key not in _PE_TABLE_CACHE:
        _PE_TABLE_CACHE[key] = _build_pe_table(int(max_len), int(d_model), dtype)
    return _PE_TABLE_CACHE[key]


def rel_positional_encoding(x, offset=0, max_len=5000, dtype=jnp.float32):
    """JAX/Pallas equivalent of RelPositionalEncoding.forward.

    Args:
      x: (batch, time, d_model) input.
      offset: position offset (Python int or traced int32 scalar). NOTE: for a
        traced offset there is no bounds check and the dynamic slice clamps to
        [0, max_len - time]; callers must respect offset + time < max_len.
      max_len: maximum table length.
      dtype: cache/return dtype of the table (use jnp.bfloat16 to halve the
        recurring per-call slice bandwidth for bf16 consumers).

    Returns:
      pos_emb: (1, time, d_model) positional embedding.
    """
    B, T, D = x.shape
    if isinstance(offset, (int, np.integer)):
        assert offset + T < max_len, (
            f"offset: {offset} + x.shape[1]: {T} is larger than the max_len: {max_len}")
    pe = _get_pe_table(max_len, D, dtype)   # built once per (max_len, D, dtype)
    # The reference forward computes x * sqrt(d_model) but discards it (dead
    # code) and returns only pos_emb; we return pos_emb directly.
    pos_emb = jax.lax.dynamic_slice_in_dim(pe, offset, T, axis=0)
    return pos_emb[None, :, :]


def _reference_pos_emb(T, D, offset, max_len):
    """Pure-JAX reference mirroring the torch table construction."""
    position = jnp.arange(0, max_len, dtype=jnp.float32)[:, None]
    div_term = jnp.exp(jnp.arange(0, D, 2, dtype=jnp.float32)
                       * (-math.log(10000.0) / D))
    pe = jnp.zeros((max_len, D), jnp.float32)
    pe = pe.at[:, 0::2].set(jnp.sin(position * div_term))
    pe = pe.at[:, 1::2].set(jnp.cos(position * div_term))
    return pe[None, offset:offset + T, :]


if __name__ == "__main__":
    key = jax.random.PRNGKey(0)

    # 1) Primary check: D = 32 -> fully lane-dense path (W = 512, ppr = 16).
    B, T, D = 2, 8, 32
    max_len, offset = 64, 3
    x = jax.random.normal(key, (B, T, D), dtype=jnp.float32)

    pos_emb = jax.block_until_ready(
        rel_positional_encoding(x, offset=offset, max_len=max_len))
    ref = _reference_pos_emb(T, D, offset, max_len)
    assert pos_emb.shape == (1, T, D), pos_emb.shape
    assert jnp.allclose(pos_emb, ref, atol=1e-5, rtol=1e-5), (
        float(jnp.max(jnp.abs(pos_emb - ref))))

    # 2) Different offset: reuses the cached table, no new kernel compile.
    pos_emb0 = jax.block_until_ready(
        rel_positional_encoding(x, offset=0, max_len=max_len))
    assert jnp.allclose(pos_emb0, _reference_pos_emb(T, D, 0, max_len),
                        atol=1e-5, rtol=1e-5)

    # 3) D = 48 (half-width does not divide 128): generalized lane-dense path
    #    (ppr = 8, W = 384, multiple of 128) instead of the old 24-lane fallback.
    D2 = 48
    x2 = jax.random.normal(key, (B, T, D2), dtype=jnp.float32)
    pos_emb2 = jax.block_until_ready(
        rel_positional_encoding(x2, offset=2, max_len=max_len))
    assert jnp.allclose(pos_emb2, _reference_pos_emb(T, D2, 2, max_len),
                        atol=1e-5, rtol=1e-5)

    # 4) Larger table -> multi-step ("parallel") grid path.  Looser tolerance:
    #    near position ~700 the f32 angle itself carries ~1e-4 rounding, same
    #    order as the torch f32 reference's own error.
    max_len3, off3, T3 = 640, 100, 16
    x3 = jax.random.normal(key, (B, T3, D), dtype=jnp.float32)
    pos_emb3 = jax.block_until_ready(
        rel_positional_encoding(x3, offset=off3, max_len=max_len3))
    assert jnp.allclose(pos_emb3, _reference_pos_emb(T3, D, off3, max_len3),
                        atol=2e-4, rtol=0.0)

    # 5) bf16 cache dtype (steady-state bandwidth lever) smoke check.
    pos_emb_bf16 = jax.block_until_ready(
        rel_positional_encoding(x, offset=offset, max_len=max_len,
                                dtype=jnp.bfloat16))
    assert pos_emb_bf16.dtype == jnp.bfloat16
    assert jnp.allclose(pos_emb_bf16.astype(jnp.float32), ref, atol=1e-2, rtol=0.0)

    print("KERNEL_OK")
</pallas_src>

<mosaic_0001>
module attributes {stable_mosaic.version = 11 : i64} {
  func.func @_pe_interleaved_kernel(%arg0: i32, %arg1: memref<1x512xi32, #tpu.memory_space<vmem>>, %arg2: memref<1x512xf32, #tpu.memory_space<vmem>>, %arg3: memref<8x512xf32, #tpu.memory_space<vmem>>) attributes {dimension_semantics = [#tpu.dimension_semantics<parallel>], iteration_bounds = array<i64: 1>, scalar_prefetch = 0 : i64, scratch_operands = 0 : i64, tpu.core_type = #tpu.core_type<tc>, window_params = [{pipeline_mode = #tpu.pipeline_mode<synchronous>, transform_indices = @transform_0, window_bounds = array<i64: 1, 512>}, {pipeline_mode = #tpu.pipeline_mode<synchronous>, transform_indices = @transform_1, window_bounds = array<i64: 1, 512>}, {transform_indices = @transform_2, window_bounds = array<i64: 8, 512>}]} {
    %0 = tpu.iota {dimensions = array<i32: 0>} : vector<8x512xi32>
    %c8_i32 = arith.constant 8 : i32
    %1 = arith.muli %arg0, %c8_i32 : i32
    %2 = vector.broadcast %1 : i32 to vector<8x512xi32>
    %3 = arith.addi %0, %2 : vector<8x512xi32>
    %4 = tpu.iota {dimensions = array<i32: 1>} : vector<8x512xi32>
    %c16_i32 = arith.constant 16 : i32
    %5 = vector.broadcast %c16_i32 : i32 to vector<8x512xi32>
    %6 = arith.muli %3, %5 : vector<8x512xi32>
    %c0 = arith.constant 0 : index
    %c0_0 = arith.constant 0 : index
    %7 = vector.load %arg1[%c0, %c0_0] : memref<1x512xi32, #tpu.memory_space<vmem>>, vector<1x512xi32>
    %8 = vector.broadcast %7 : vector<1x512xi32> to vector<8x512xi32>
    %9 = arith.addi %6, %8 : vector<8x512xi32>
    %10 = arith.sitofp %9 : vector<8x512xi32> to vector<8x512xf32>
    %c0_1 = arith.constant 0 : index
    %c0_2 = arith.constant 0 : index
    %11 = vector.load %arg2[%c0_1, %c0_2] : memref<1x512xf32, #tpu.memory_space<vmem>>, vector<1x512xf32>
    %12 = vector.broadcast %11 : vector<1x512xf32> to vector<8x512xf32>
    %13 = arith.mulf %10, %12 : vector<8x512xf32>
    %c2_i32 = arith.constant 2 : i32
    %c0_i32 = arith.constant 0 : i32
    %14 = arith.cmpi eq, %c2_i32, %c0_i32 : i32
    %c1_i32 = arith.constant 1 : i32
    %15 = arith.select %14, %c1_i32, %c2_i32 : i32
    %16 = vector.broadcast %15 : i32 to vector<8x512xi32>
    %17 = arith.remsi %4, %16 : vector<8x512xi32>
    %c0_i32_3 = arith.constant 0 : i32
    %18 = vector.broadcast %c0_i32_3 : i32 to vector<8x512xi32>
    %19 = arith.cmpi ne, %17, %18 : vector<8x512xi32>
    %c0_i32_4 = arith.constant 0 : i32
    %20 = vector.broadcast %c0_i32_4 : i32 to vector<8x512xi32>
    %21 = arith.cmpi slt, %17, %20 : vector<8x512xi32>
    %c0_i32_5 = arith.constant 0 : i32
    %22 = arith.cmpi slt, %15, %c0_i32_5 : i32
    %23 = vector.broadcast %22 : i1 to vector<8x512xi1>
    %24 = vector.broadcast %23 : vector<8x512xi1> to vector<8x512xi1>
    %25 = arith.xori %21, %24 : vector<8x512xi1>
    %26 = arith.andi %25, %19 : vector<8x512xi1>
    %27 = vector.broadcast %15 : i32 to vector<8x512xi32>
    %28 = arith.addi %17, %27 : vector<8x512xi32>
    %29 = arith.select %26, %28, %17 : vector<8x512xi1>, vector<8x512xi32>
    %c1_i32_6 = arith.constant 1 : i32
    %30 = vector.broadcast %c1_i32_6 : i32 to vector<8x512xi32>
    %31 = arith.cmpi eq, %29, %30 : vector<8x512xi32>
    %32 = math.cos %13 : vector<8x512xf32>
    %33 = math.sin %13 : vector<8x512xf32>
    %34 = arith.select %31, %32, %33 : vector<8x512xi1>, vector<8x512xf32>
    %c0_7 = arith.constant 0 : index
    %c0_8 = arith.constant 0 : index
    %35 = vector.load %arg3[%c0_7, %c0_8] : memref<8x512xf32, #tpu.memory_space<vmem>>, vector<8x512xf32>
    tpu.vector_store %arg3[%c0_7, %c0_8], %34 {strides = array<i32>} : memref<8x512xf32, #tpu.memory_space<vmem>>, vector<8x512xf32>,
    return
  }
  func.func @transform_0(%arg0: i32) -> (i32, i32) {
    %c0_i32 = arith.constant 0 : i32
    %c0_i32_0 = arith.constant 0 : i32
    %c0_i32_1 = arith.constant 0 : i32
    return %c0_i32, %c0_i32_0 : i32, i32
  }
  func.func @transform_1(%arg0: i32) -> (i32, i32) {
    %c0_i32 = arith.constant 0 : i32
    %c0_i32_0 = arith.constant 0 : i32
    %c0_i32_1 = arith.constant 0 : i32
    return %c0_i32, %c0_i32_0 : i32, i32
  }
  func.func @transform_2(%arg0: i32) -> (i32, i32) {
    %c0_i32 = arith.constant 0 : i32
    %c0_i32_0 = arith.constant 0 : i32
    return %arg0, %c0_i32 : i32, i32
  }
}

</mosaic_0001>

<llo_original>
// kernel: tpu_custom_call.1
$region0: #{tpu_custom_call.1}
  #allocation0 [shape = 'u32[]', space=smem, size = 0x4, offset = 0x4, fixed_abs, tag = 'smem constant byte address 0x4 - core index']
  #allocation1 [shape = 'u32[72,128]{1,0:T(1,128)}', space=vmem, size = 0x9000, scoped, tag = 'internal scratch']
  %s0 = inlined_call_operand.hbm [shape: s32[1,512], index: 0, kind: input, shape index: {}]
  %s1 = inlined_call_operand.hbm [shape: f32[1,512], index: 1, kind: input, shape index: {}]
  %s2 = inlined_call_operand.hbm [shape: f32[8,512], index: 2, kind: output, shape index: {}]
  %s3 = sld [smem:[#allocation0]]
  $region26: #{tpu_custom_call.1} parent=0
    _
  %s5 = ssub.s32 1, %s3
  %s6 = scalar_select 0, %s5, %s3
  $region1: #{tpu_custom_call.1} parent=0
    #allocation2 [shape = 'u8[2048]{0}', space=vmem, size = 0x800, scoped, tag = 'input window, operand 0, single buffered']
    #allocation3 [shape = 's32[1]{0}', space=sflag, size = 0x4, scoped, tag = 'scoped memory for tpu_custom_call.1']
    #allocation4 [shape = 's32[1]{0}', space=sflag, size = 0x4, scoped, tag = 'scoped memory for tpu_custom_call.1']
    #allocation5 [shape = 'u8[2048]{0}', space=vmem, size = 0x800, scoped, tag = 'input window, operand 1, single buffered']
    #allocation6 [shape = 's32[1]{0}', space=sflag, size = 0x4, scoped, tag = 'scoped memory for tpu_custom_call.1']
    #allocation7 [shape = 'u8[16384]{0}', space=vmem, size = 0x4000, scoped, tag = 'output window, operand 0, single buffered']
    %7 = vsyncpa [#allocation3], 0
    %8 = vsyncpa [#allocation6], 0
    %9 = vsyncpa [#allocation4], 0
    // Predicated region
    $region2: #{tpu_custom_call.1} parent=1 // pred_check
      _
    $region3: #{tpu_custom_call.1} parent=1 // pred_check_branch
      %11 = sbr.rel (0) target = $region5
    $region4: #{tpu_custom_call.1} parent=1 // pred_region
      %13 = vsyncadd [#allocation3], 0
      %s15 = sshll.u32 %s0, 4
      %s16 = int_to_ptr.hbm [resolvable:$true] %s15
      %s17 = sshll.u32 [#allocation2], 4
      %s18 = int_to_ptr.vmem [resolvable:$true] %s17
      %20 = dma.hbm_to_vmem [thread:$0]  %s16, 64, %s18, [#allocation3]
    $region5: #{tpu_custom_call.1} parent=1 // pred_fallthru
      _
    // Predicated region
    $region6: #{tpu_custom_call.1} parent=1 // pred_check
      _
    $region7: #{tpu_custom_call.1} parent=1 // pred_check_branch
      %22 = sbr.rel (0) target = $region9
    $region8: #{tpu_custom_call.1} parent=1 // pred_region
      %24 = vsyncadd [#allocation6], 0
      %s26 = sshll.u32 %s1, 4
      %s27 = int_to_ptr.hbm [resolvable:$true] %s26
      %s28 = sshll.u32 [#allocation5], 4
      %s29 = int_to_ptr.vmem [resolvable:$true] %s28
      %31 = dma.hbm_to_vmem [thread:$0]  %s27, 64, %s29, [#allocation6]
    $region9: #{tpu_custom_call.1} parent=1 // pred_fallthru
      _
    // Predicated region
    $region10: #{tpu_custom_call.1} parent=1 // pred_check
      _
    $region11: #{tpu_custom_call.1} parent=1 // pred_check_branch
      %33 = sbr.rel (0) target = $region13
    $region12: #{tpu_custom_call.1} parent=1 // pred_region
      %35 = dma.done [#allocation3], 64
    $region13: #{tpu_custom_call.1} parent=1 // pred_fallthru
      _
    // Predicated region
    $region14: #{tpu_custom_call.1} parent=1 // pred_check
      _
    $region15: #{tpu_custom_call.1} parent=1 // pred_check_branch
      %37 = sbr.rel (0) target = $region17
    $region16: #{tpu_custom_call.1} parent=1 // pred_region
      %39 = dma.done [#allocation6], 64
    $region17: #{tpu_custom_call.1} parent=1 // pred_fallthru
      _
    %v40 = vlaneseq
    %v41 = vshrl.u32 %v40, 7
    %s42 = smul.u32 0, 8
    %v43 = vstv %s42
    %v44 = vadd.s32 %v41, %v43
    %v45 = vlaneseq
    %v46 = vand.u32 %v45, 127
    %v47 = vadd.s32 %v46, 128
    %v48 = vadd.s32 %v46, 256
    %v49 = vadd.s32 %v46, 384
    %v50 = vmul.u32 %v44, 16
    %v51 = vld [vmem:[#allocation2] sm:$0xf]
    %v52 = vperm.slane %v51, 0
    %v53 = vperm.slane %v51, 1
    %v54 = vperm.slane %v51, 2
    %v55 = vperm.slane %v51, 3
    %v56 = vadd.s32 %v50, %v52
    %v57 = vadd.s32 %v50, %v53
    %v58 = vadd.s32 %v50, %v54
    %v59 = vadd.s32 %v50, %v55
    %v60 = vcvt.s32.f32 %v56
    %v61 = vcvt.s32.f32 %v57
    %v62 = vcvt.s32.f32 %v58
    %v63 = vcvt.s32.f32 %v59
    %v64 = vld [vmem:[#allocation5] sm:$0xf]
    %v66 = vperm.slane %v64, 0
    %v67 = vperm.slane %v64, 1
    %v68 = vperm.slane %v64, 2
    %v69 = vperm.slane %v64, 3
    %v74 = vmul.f32 %v60, %v66
    %v75 = vmul.f32 %v61, %v67
    %v76 = vmul.f32 %v62, %v68
    %v77 = vmul.f32 %v63, %v69
    %vm78 = vcmp.lt.s32.totalorder %v46, 0
    %v79 = vsub.s32 0, %v46
    %v80 = vsel %vm78, %v79, %v46
    %v81 = vshrl.u32 %v80, 1
    %v82 = vand.u32 %v80, 1
    %v83 = vsub.s32 0, %v82
    %v84 = vsel %vm78, %v83, %v82
    %vm85 = vcmp.lt.s32.totalorder %v47, 0
    %v86 = vsub.s32 0, %v47
    %v87 = vsel %vm85, %v86, %v47
    %v88 = vshrl.u32 %v87, 1
    %v89 = vand.u32 %v87, 1
    %v90 = vsub.s32 0, %v89
    %v91 = vsel %vm85, %v90, %v89
    %vm92 = vcmp.lt.s32.totalorder %v48, 0
    %v93 = vsub.s32 0, %v48
    %v94 = vsel %vm92, %v93, %v48
    %v95 = vshrl.u32 %v94, 1
    %v96 = vand.u32 %v94, 1
    %v97 = vsub.s32 0, %v96
    %v98 = vsel %vm92, %v97, %v96
    %vm99 = vcmp.lt.s32.totalorder %v49, 0
    %v100 = vsub.s32 0, %v49
    %v101 = vsel %vm99, %v100, %v49
    %v102 = vshrl.u32 %v101, 1
    %v103 = vand.u32 %v101, 1
    %v104 = vsub.s32 0, %v103
    %v105 = vsel %vm99, %v104, %v103
    %vm106 = vcmp.ne.s32.totalorder %v84, 0
    %vm107 = vcmp.ne.s32.totalorder %v91, 0
    %vm108 = vcmp.ne.s32.totalorder %v98, 0
    %vm109 = vcmp.ne.s32.totalorder %v105, 0
    %vm110 = vcmp.lt.s32.totalorder %v84, 0
    %vm111 = vcmp.lt.s32.totalorder %v91, 0
    %vm112 = vcmp.lt.s32.totalorder %v98, 0
    %vm113 = vcmp.lt.s32.totalorder %v105, 0
    %vm114 = vmand %vm110, %vm106
    %vm115 = vmand %vm111, %vm107
    %vm116 = vmand %vm112, %vm108
    %vm117 = vmand %vm113, %vm109
    %v118 = vadd.s32 %v84, 2
    %v119 = vadd.s32 %v91, 2
    %v120 = vadd.s32 %v98, 2
    %v121 = vadd.s32 %v105, 2
    %v122 = vsel %vm114, %v118, %v84
    %v123 = vsel %vm115, %v119, %v91
    %v124 = vsel %vm116, %v120, %v98
    %v125 = vsel %vm117, %v121, %v105
    %vm126 = vcmp.eq.s32.totalorder %v122, 1
    %vm127 = vcmp.eq.s32.totalorder %v123, 1
    %vm128 = vcmp.eq.s32.totalorder %v124, 1
    %vm129 = vcmp.eq.s32.totalorder %v125, 1
    %v130 = vand.u32 2147483647, %v74
    %vm131 = vcmp.le.f32.partialorder %v130, 0.7853982
    %vm132 = vcmp.lt.s32.totalorder %v74, 0
    %v133 = vand.u32 %v74, 2139095040
    %v134 = vshrl.u32 %v133, 23
    %v135 = vsub.s32 %v134, 127
    %v136 = vand.u32 2147483647, %v74
    %v137 = vand.u32 %v136, 8388607
    %v138 = vor.u32 %v137, 8388608
    %v139 = vsub.s32 0, %v138
    %v140 = vadd.s32 %v135, 1
    %vm141 = vcmp.gt.s32.totalorder %v140, 0
    %v142 = vsel %vm141, %v140, 0
    %v143 = vshrl.u32 %v142, 5
    %v144 = vand.u32 %v142, 31
    %v145 = vsub.s32 32, %v144
    %v146 = vshrl.u32 683565275, %v145
    %v147 = vshll.u32 683565275, %v144
    %v148 = vshrl.u32 2475754826, %v145
    %v149 = vor.u32 %v147, %v148
    %v150 = vshll.u32 2475754826, %v144
    %v151 = vshrl.u32 2131351028, %v145
    %v152 = vor.u32 %v150, %v151
    %v153 = vshll.u32 2131351028, %v144
    %v154 = vshrl.u32 2102212464, %v145
    %v155 = vor.u32 %v153, %v154
    %v156 = vshll.u32 2102212464, %v144
    %v157 = vshrl.u32 920167782, %v145
    %v158 = vor.u32 %v156, %v157
    %v159 = vshll.u32 920167782, %v144
    %v160 = vshrl.u32 1326507024, %v145
    %v161 = vor.u32 %v159, %v160
    %vm162 = vcmp.lt.s32.totalorder %v143, 1
    %vm163 = vcmp.lt.s32.totalorder %v143, 2
    %vm164 = vcmp.lt.s32.totalorder %v143, 3
    %vm165 = vcmp.lt.s32.totalorder %v143, 4
    %v166 = vsel %vm162, %v146, %v149
    %v167 = vsel %vm165, %v155, 2102212464
    %v168 = vsel %vm164, %v152, %v167
    %v169 = vsel %vm163, %v166, %v168
    %v170 = vsel %vm162, %v149, %v152
    %v171 = vsel %vm165, %v158, 920167782
    %v172 = vsel %vm164, %v155, %v171
    %v173 = vsel %vm163, %v170, %v172
    %v174 = vsel %vm162, %v152, %v155
    %v175 = vsel %vm165, %v161, 1326507024
    %v176 = vsel %vm164, %v158, %v175
    %v177 = vsel %vm163, %v174, %v176
    %v178 = vshll.u32 %v138, 8
    %v179 = vand.u32 %v178, 65535
    %v180 = vshrl.u32 %v178, 16
    %v181 = vand.u32 %v177, 65535
    %v182 = vshrl.u32 %v177, 16
    %v183 = vmul.u32 %v179, %v181
    %v184 = vmul.u32 %v179, %v182
    %v185 = vmul.u32 %v180, %v181
    %v186 = vmul.u32 %v180, %v182
    %v187 = vshll.u32 %v184, 16
    %v188 = vshrl.u32 %v184, 16
    %v189 = vshll.u32 %v185, 16
    %v190 = vshrl.u32 %v185, 16
    %vm191 = vc.u32 %v183, %v187
    %v192 = vsel %vm191, 1, 0
    %v193 = vadd.s32 %v183, %v187
    %v194 = vadd.s32 %v186, %v192
    %vm195 = vc.u32 %v193, %v189
    %v196 = vsel %vm195, 1, 0
    %v197 = vadd.s32 %v193, %v189
    %v198 = vadd.s32 %v194, %v196
    %v199 = vadd.s32 %v198, %v188
    %v200 = vadd.s32 %v199, %v190
    %v201 = vand.u32 %v178, 65535
    %v202 = vshrl.u32 %v178, 16
    %v203 = vand.u32 %v173, 65535
    %v204 = vshrl.u32 %v173, 16
    %v205 = vmul.u32 %v201, %v203
    %v206 = vmul.u32 %v201, %v204
    %v207 = vmul.u32 %v202, %v203
    %v208 = vmul.u32 %v202, %v204
    %v209 = vshll.u32 %v206, 16
    %v210 = vshrl.u32 %v206, 16
    %v211 = vshll.u32 %v207, 16
    %v212 = vshrl.u32 %v207, 16
    %vm213 = vc.u32 %v205, %v209
    %v214 = vsel %vm213, 1, 0
    %v215 = vadd.s32 %v205, %v209
    %v216 = vadd.s32 %v208, %v214
    %vm217 = vc.u32 %v215, %v211
    %v218 = vsel %vm217, 1, 0
    %v219 = vadd.s32 %v215, %v211
    %v220 = vadd.s32 %v216, %v218
    %v221 = vadd.s32 %v220, %v210
    %v222 = vadd.s32 %v221, %v212
    %v223 = vmul.u32 %v178, %v169
    %v224 = vadd.s32 %v200, %v219
    %vm225 = vc.u32 %v200, %v219
    %v226 = vadd.s32 %v222, 1
    %v227 = vsel %vm225, %v226, %v222
    %v228 = vadd.s32 %v223, %v227
    %v229 = vadd.s32 %v228, 536870912
    %v230 = vshrl.u32 %v229, 30
    %v231 = vshll.u32 %v230, 30
    %v232 = vsub.s32 %v228, %v231
    %vm233 = vcmp.lt.s32.totalorder %v232, 0
    %v234 = vsub.s32 0, %v232
    %v235 = vsel %vm233, %v234, %v232
    %v236 = vclz %v235
    %v237 = vsub.s32 %v236, 2
    %vm238 = vcmp.gt.s32.totalorder 0, %v237
    %v239 = vsel %vm238, 0, %v237
    %v240 = vsub.s32 32, %v239
    %v241 = vshll.u32 %v232, %v239
    %v242 = vshrl.u32 %v224, %v240
    %v243 = vor.u32 %v241, %v242
    %v244 = vsub.s32 4294967266, %v239
    %v245 = vadd.s32 %v244, 127
    %v246 = vshll.u32 %v245, 23
    %v247 = vor.u32 4788187, %v246
    %v248 = vand.u32 2147483647, %v247
    %v250 = vcvt.s32.f32 %v243
    %v251 = vmul.f32 %v250, %v248
    %v252 = vxor.u32 %v251, 2147483648
    %v253 = vsel %vm132, %v252, %v251
    %v254 = vsub.s32 4, %v230
    %v255 = vsel %vm132, %v254, %v230
    %v256 = vsel %vm131, %v74, %v253
    %v257 = vsel %vm131, 0, %v255
    %v258 = vmul.f32 %v256, %v256
    %v259 = vmul.f32 %v258, -0.001358992
    %v260 = vadd.f32 %v259, 0.041655596
    %v261 = vmul.f32 %v258, %v260
    %v262 = vadd.f32 %v261, -0.4999988
    %v263 = vmul.f32 %v258, %v262
    %v264 = vadd.f32 1.0, %v263
    %v265 = vmul.f32 %v256, %v256
    %v266 = vmul.f32 %v265, -0.00019511016
    %v267 = vadd.f32 %v266, 0.008332121
    %v268 = vmul.f32 %v265, %v267
    %v269 = vadd.f32 %v268, -0.16666654
    %v270 = vmul.f32 %v265, %v269
    %v271 = vadd.f32 %v270, 1.0
    %v272 = vmul.f32 %v271, %v256
    %vm273 = vweird.f32 %v74
    %v274 = vand.u32 %v257, 3
    %vm275 = vcmp.lt.s32.totalorder %v274, 2
    %vm276 = vcmp.eq.s32.totalorder %v274, 0
    %v277 = vxor.u32 %v272, 2147483648
    %v278 = vsel %vm276, %v264, %v277
    %vm279 = vcmp.eq.s32.totalorder %v274, 2
    %v280 = vxor.u32 %v264, 2147483648
    %v281 = vsel %vm279, %v280, %v272
    %v282 = vsel %vm275, %v278, %v281
    %v283 = vsel %vm273, nan, %v282
    %v284 = vand.u32 2147483647, %v75
    %vm285 = vcmp.le.f32.partialorder %v284, 0.7853982
    %vm286 = vcmp.lt.s32.totalorder %v75, 0
    %v287 = vand.u32 %v75, 2139095040
    %v288 = vshrl.u32 %v287, 23
    %v289 = vsub.s32 %v288, 127
    %v290 = vand.u32 2147483647, %v75
    %v291 = vand.u32 %v290, 8388607
    %v292 = vor.u32 %v291, 8388608
    %v293 = vsub.s32 0, %v292
    %v294 = vadd.s32 %v289, 1
    %vm295 = vcmp.gt.s32.totalorder %v294, 0
    %v296 = vsel %vm295, %v294, 0
    %v297 = vshrl.u32 %v296, 5
    %v298 = vand.u32 %v296, 31
    %v299 = vsub.s32 32, %v298
    %v300 = vshrl.u32 683565275, %v299
    %v301 = vshll.u32 683565275, %v298
    %v302 = vshrl.u32 2475754826, %v299
    %v303 = vor.u32 %v301, %v302
    %v304 = vshll.u32 2475754826, %v298
    %v305 = vshrl.u32 2131351028, %v299
    %v306 = vor.u32 %v304, %v305
    %v307 = vshll.u32 2131351028, %v298
    %v308 = vshrl.u32 2102212464, %v299
    %v309 = vor.u32 %v307, %v308
    %v310 = vshll.u32 2102212464, %v298
    %v311 = vshrl.u32 920167782, %v299
    %v312 = vor.u32 %v310, %v311
    %v313 = vshll.u32 920167782, %v298
    %v314 = vshrl.u32 1326507024, %v299
    %v315 = vor.u32 %v313, %v314
    %vm316 = vcmp.lt.s32.totalorder %v297, 1
    %vm317 = vcmp.lt.s32.totalorder %v297, 2
    %vm318 = vcmp.lt.s32.totalorder %v297, 3
    %vm319 = vcmp.lt.s32.totalorder %v297, 4
    %v320 = vsel %vm316, %v300, %v303
    %v321 = vsel %vm319, %v309, 2102212464
    %v322 = vsel %vm318, %v306, %v321
    %v323 = vsel %vm317, %v320, %v322
    %v324 = vsel %vm316, %v303, %v306
    %v325 = vsel %vm319, %v312, 920167782
    %v326 = vsel %vm318, %v309, %v325
    %v327 = vsel %vm317, %v324, %v326
    %v328 = vsel %vm316, %v306, %v309
    %v329 = vsel %vm319, %v315, 1326507024
    %v330 = vsel %vm318, %v312, %v329
    %v331 = vsel %vm317, %v328, %v330
    %v332 = vshll.u32 %v292, 8
    %v333 = vand.u32 %v332, 65535
    %v334 = vshrl.u32 %v332, 16
    %v335 = vand.u32 %v331, 65535
    %v336 = vshrl.u32 %v331, 16
    %v337 = vmul.u32 %v333, %v335
    %v338 = vmul.u32 %v333, %v336
    %v339 = vmul.u32 %v334, %v335
    %v340 = vmul.u32 %v334, %v336
    %v341 = vshll.u32 %v338, 16
    %v342 = vshrl.u32 %v338, 16
    %v343 = vshll.u32 %v339, 16
    %v344 = vshrl.u32 %v339, 16
    %vm345 = vc.u32 %v337, %v341
    %v346 = vsel %vm345, 1, 0
    %v347 = vadd.s32 %v337, %v341
    %v348 = vadd.s32 %v340, %v346
    %vm349 = vc.u32 %v347, %v343
    %v350 = vsel %vm349, 1, 0
    %v351 = vadd.s32 %v347, %v343
    %v352 = vadd.s32 %v348, %v350
    %v353 = vadd.s32 %v352, %v342
    %v354 = vadd.s32 %v353, %v344
    %v355 = vand.u32 %v332, 65535
    %v356 = vshrl.u32 %v332, 16
    %v357 = vand.u32 %v327, 65535
    %v358 = vshrl.u32 %v327, 16
    %v359 = vmul.u32 %v355, %v357
    %v360 = vmul.u32 %v355, %v358
    %v361 = vmul.u32 %v356, %v357
    %v362 = vmul.u32 %v356, %v358
    %v363 = vshll.u32 %v360, 16
    %v364 = vshrl.u32 %v360, 16
    %v365 = vshll.u32 %v361, 16
    %v366 = vshrl.u32 %v361, 16
    %vm367 = vc.u32 %v359, %v363
    %v368 = vsel %vm367, 1, 0
    %v369 = vadd.s32 %v359, %v363
    %v370 = vadd.s32 %v362, %v368
    %vm371 = vc.u32 %v369, %v365
    %v372 = vsel %vm371, 1, 0
    %v373 = vadd.s32 %v369, %v365
    %v374 = vadd.s32 %v370, %v372
    %v375 = vadd.s32 %v374, %v364
    %v376 = vadd.s32 %v375, %v366
    %v377 = vmul.u32 %v332, %v323
    %v378 = vadd.s32 %v354, %v373
    %vm379 = vc.u32 %v354, %v373
    %v380 = vadd.s32 %v376, 1
    %v381 = vsel %vm379, %v380, %v376
    %v382 = vadd.s32 %v377, %v381
    %v383 = vadd.s32 %v382, 536870912
    %v384 = vshrl.u32 %v383, 30
    %v385 = vshll.u32 %v384, 30
    %v386 = vsub.s32 %v382, %v385
    %vm387 = vcmp.lt.s32.totalorder %v386, 0
    %v388 = vsub.s32 0, %v386
    %v389 = vsel %vm387, %v388, %v386
    %v390 = vclz %v389
    %v391 = vsub.s32 %v390, 2
    %vm392 = vcmp.gt.s32.totalorder 0, %v391
    %v393 = vsel %vm392, 0, %v391
    %v394 = vsub.s32 32, %v393
    %v395 = vshll.u32 %v386, %v393
    %v396 = vshrl.u32 %v378, %v394
    %v397 = vor.u32 %v395, %v396
    %v398 = vsub.s32 4294967266, %v393
    %v399 = vadd.s32 %v398, 127
    %v400 = vshll.u32 %v399, 23
    %v401 = vor.u32 4788187, %v400
    %v402 = vand.u32 2147483647, %v401
    %v404 = vcvt.s32.f32 %v397
    %v405 = vmul.f32 %v404, %v402
    %v406 = vxor.u32 %v405, 2147483648
    %v407 = vsel %vm286, %v406, %v405
    %v408 = vsub.s32 4, %v384
    %v409 = vsel %vm286, %v408, %v384
    %v410 = vsel %vm285, %v75, %v407
    %v411 = vsel %vm285, 0, %v409
    %v412 = vmul.f32 %v410, %v410
    %v413 = vmul.f32 %v412, -0.001358992
    %v414 = vadd.f32 %v413, 0.041655596
    %v415 = vmul.f32 %v412, %v414
    %v416 = vadd.f32 %v415, -0.4999988
    %v417 = vmul.f32 %v412, %v416
    %v418 = vadd.f32 1.0, %v417
    %v419 = vmul.f32 %v410, %v410
    %v420 = vmul.f32 %v419, -0.00019511016
    %v421 = vadd.f32 %v420, 0.008332121
    %v422 = vmul.f32 %v419, %v421
    %v423 = vadd.f32 %v422, -0.16666654
    %v424 = vmul.f32 %v419, %v423
    %v425 = vadd.f32 %v424, 1.0
    %v426 = vmul.f32 %v425, %v410
    %vm427 = vweird.f32 %v75
    %v428 = vand.u32 %v411, 3
    %vm429 = vcmp.lt.s32.totalorder %v428, 2
    %vm430 = vcmp.eq.s32.totalorder %v428, 0
    %v431 = vxor.u32 %v426, 2147483648
    %v432 = vsel %vm430, %v418, %v431
    %vm433 = vcmp.eq.s32.totalorder %v428, 2
    %v434 = vxor.u32 %v418, 2147483648
    %v435 = vsel %vm433, %v434, %v426
    %v436 = vsel %vm429, %v432, %v435
    %v437 = vsel %vm427, nan, %v436
    %v438 = vand.u32 2147483647, %v76
    %vm439 = vcmp.le.f32.partialorder %v438, 0.7853982
    %vm440 = vcmp.lt.s32.totalorder %v76, 0
    %v441 = vand.u32 %v76, 2139095040
    %v442 = vshrl.u32 %v441, 23
    %v443 = vsub.s32 %v442, 127
    %v444 = vand.u32 2147483647, %v76
    %v445 = vand.u32 %v444, 8388607
    %v446 = vor.u32 %v445, 8388608
    %v447 = vsub.s32 0, %v446
    %v448 = vadd.s32 %v443, 1
    %vm449 = vcmp.gt.s32.totalorder %v448, 0
    %v450 = vsel %vm449, %v448, 0
    %v451 = vshrl.u32 %v450, 5
    %v452 = vand.u32 %v450, 31
    %v453 = vsub.s32 32, %v452
    %v454 = vshrl.u32 683565275, %v453
    %v455 = vshll.u32 683565275, %v452
    %v456 = vshrl.u32 2475754826, %v453
    %v457 = vor.u32 %v455, %v456
    %v458 = vshll.u32 2475754826, %v452
    %v459 = vshrl.u32 2131351028, %v453
    %v460 = vor.u32 %v458, %v459
    %v461 = vshll.u32 2131351028, %v452
    %v462 = vshrl.u32 2102212464, %v453
    %v463 = vor.u32 %v461, %v462
    %v464 = vshll.u32 2102212464, %v452
    %v465 = vshrl.u32 920167782, %v453
    %v466 = vor.u32 %v464, %v465
    %v467 = vshll.u32 920167782, %v452
    %v468 = vshrl.u32 1326507024, %v453
    %v469 = vor.u32 %v467, %v468
    %vm470 = vcmp.lt.s32.totalorder %v451, 1
    %vm471 = vcmp.lt.s32.totalorder %v451, 2
    %vm472 = vcmp.lt.s32.totalorder %v451, 3
    %vm473 = vcmp.lt.s32.totalorder %v451, 4
    %v474 = vsel %vm470, %v454, %v457
    %v475 = vsel %vm473, %v463, 2102212464
    %v476 = vsel %vm472, %v460, %v475
    %v477 = vsel %vm471, %v474, %v476
    %v478 = vsel %vm470, %v457, %v460
    %v479 = vsel %vm473, %v466, 920167782
    %v480 = vsel %vm472, %v463, %v479
    %v481 = vsel %vm471, %v478, %v480
    %v482 = vsel %vm470, %v460, %v463
    %v483 = vsel %vm473, %v469, 1326507024
    %v484 = vsel %vm472, %v466, %v483
    %v485 = vsel %vm471, %v482, %v484
    %v486 = vshll.u32 %v446, 8
    %v487 = vand.u32 %v486, 65535
    %v488 = vshrl.u32 %v486, 16
    %v489 = vand.u32 %v485, 65535
    %v490 = vshrl.u32 %v485, 16
    %v491 = vmul.u32 %v487, %v489
    %v492 = vmul.u32 %v487, %v490
    %v493 = vmul.u32 %v488, %v489
    %v494 = vmul.u32 %v488, %v490
    %v495 = vshll.u32 %v492, 16
    %v496 = vshrl.u32 %v492, 16
    %v497 = vshll.u32 %v493, 16
    %v498 = vshrl.u32 %v493, 16
    %vm499 = vc.u32 %v491, %v495
    %v500 = vsel %vm499, 1, 0
    %v501 = vadd.s32 %v491, %v495
    %v502 = vadd.s32 %v494, %v500
    %vm503 = vc.u32 %v501, %v497
    %v504 = vsel %vm503, 1, 0
    %v505 = vadd.s32 %v501, %v497
    %v506 = vadd.s32 %v502, %v504
    %v507 = vadd.s32 %v506, %v496
    %v508 = vadd.s32 %v507, %v498
    %v509 = vand.u32 %v486, 65535
    %v510 = vshrl.u32 %v486, 16
    %v511 = vand.u32 %v481, 65535
    %v512 = vshrl.u32 %v481, 16
    %v513 = vmul.u32 %v509, %v511
    %v514 = vmul.u32 %v509, %v512
    %v515 = vmul.u32 %v510, %v511
    %v516 = vmul.u32 %v510, %v512
    %v517 = vshll.u32 %v514, 16
    %v518 = vshrl.u32 %v514, 16
    %v519 = vshll.u32 %v515, 16
    %v520 = vshrl.u32 %v515, 16
    %vm521 = vc.u32 %v513, %v517
    %v522 = vsel %vm521, 1, 0
    %v523 = vadd.s32 %v513, %v517
    %v524 = vadd.s32 %v516, %v522
    %vm525 = vc.u32 %v523, %v519
    %v526 = vsel %vm525, 1, 0
    %v527 = vadd.s32 %v523, %v519
    %v528 = vadd.s32 %v524, %v526
    %v529 = vadd.s32 %v528, %v518
    %v530 = vadd.s32 %v529, %v520
    %v531 = vmul.u32 %v486, %v477
    %v532 = vadd.s32 %v508, %v527
    %vm533 = vc.u32 %v508, %v527
    %v534 = vadd.s32 %v530, 1
    %v535 = vsel %vm533, %v534, %v530
    %v536 = vadd.s32 %v531, %v535
    %v537 = vadd.s32 %v536, 536870912
    %v538 = vshrl.u32 %v537, 30
    %v539 = vshll.u32 %v538, 30
    %v540 = vsub.s32 %v536, %v539
    %vm541 = vcmp.lt.s32.totalorder %v540, 0
    %v542 = vsub.s32 0, %v540
    %v543 = vsel %vm541, %v542, %v540
    %v544 = vclz %v543
    %v545 = vsub.s32 %v544, 2
    %vm546 = vcmp.gt.s32.totalorder 0, %v545
    %v547 = vsel %vm546, 0, %v545
    %v548 = vsub.s32 32, %v547
    %v549 = vshll.u32 %v540, %v547
    %v550 = vshrl.u32 %v532, %v548
    %v551 = vor.u32 %v549, %v550
    %v552 = vsub.s32 4294967266, %v547
    %v553 = vadd.s32 %v552, 127
    %v554 = vshll.u32 %v553, 23
    %v555 = vor.u32 4788187, %v554
    %v556 = vand.u32 2147483647, %v555
    %v558 = vcvt.s32.f32 %v551
    %v559 = vmul.f32 %v558, %v556
    %v560 = vxor.u32 %v559, 2147483648
    %v561 = vsel %vm440, %v560, %v559
    %v562 = vsub.s32 4, %v538
    %v563 = vsel %vm440, %v562, %v538
    %v564 = vsel %vm439, %v76, %v561
    %v565 = vsel %vm439, 0, %v563
    %v566 = vmul.f32 %v564, %v564
    %v567 = vmul.f32 %v566, -0.001358992
    %v568 = vadd.f32 %v567, 0.041655596
    %v569 = vmul.f32 %v566, %v568
    %v570 = vadd.f32 %v569, -0.4999988
    %v571 = vmul.f32 %v566, %v570
    %v572 = vadd.f32 1.0, %v571
    %v573 = vmul.f32 %v564, %v564
    %v574 = vmul.f32 %v573, -0.00019511016
    %v575 = vadd.f32 %v574, 0.008332121
    %v576 = vmul.f32 %v573, %v575
    %v577 = vadd.f32 %v576, -0.16666654
    %v578 = vmul.f32 %v573, %v577
    %v579 = vadd.f32 %v578, 1.0
    %v580 = vmul.f32 %v579, %v564
    %vm581 = vweird.f32 %v76
    %v582 = vand.u32 %v565, 3
    %vm583 = vcmp.lt.s32.totalorder %v582, 2
    %vm584 = vcmp.eq.s32.totalorder %v582, 0
    %v585 = vxor.u32 %v580, 2147483648
    %v586 = vsel %vm584, %v572, %v585
    %vm587 = vcmp.eq.s32.totalorder %v582, 2
    %v588 = vxor.u32 %v572, 2147483648
    %v589 = vsel %vm587, %v588, %v580
    %v590 = vsel %vm583, %v586, %v589
    %v591 = vsel %vm581, nan, %v590
    %v592 = vand.u32 2147483647, %v77
    %vm593 = vcmp.le.f32.partialorder %v592, 0.7853982
    %vm594 = vcmp.lt.s32.totalorder %v77, 0
    %v595 = vand.u32 %v77, 2139095040
    %v596 = vshrl.u32 %v595, 23
    %v597 = vsub.s32 %v596, 127
    %v598 = vand.u32 2147483647, %v77
    %v599 = vand.u32 %v598, 8388607
    %v600 = vor.u32 %v599, 8388608
    %v601 = vsub.s32 0, %v600
    %v602 = vadd.s32 %v597, 1
    %vm603 = vcmp.gt.s32.totalorder %v602, 0
    %v604 = vsel %vm603, %v602, 0
    %v605 = vshrl.u32 %v604, 5
    %v606 = vand.u32 %v604, 31
    %v607 = vsub.s32 32, %v606
    %v608 = vshrl.u32 683565275, %v607
    %v609 = vshll.u32 683565275, %v606
    %v610 = vshrl.u32 2475754826, %v607
    %v611 = vor.u32 %v609, %v610
    %v612 = vshll.u32 2475754826, %v606
    %v613 = vshrl.u32 2131351028, %v607
    %v614 = vor.u32 %v612, %v613
    %v615 = vshll.u32 2131351028, %v606
    %v616 = vshrl.u32 2102212464, %v607
    %v617 = vor.u32 %v615, %v616
    %v618 = vshll.u32 2102212464, %v606
    %v619 = vshrl.u32 920167782, %v607
    %v620 = vor.u32 %v618, %v619
    %v621 = vshll.u32 920167782, %v606
    %v622 = vshrl.u32 1326507024, %v607
    %v623 = vor.u32 %v621, %v622
    %vm624 = vcmp.lt.s32.totalorder %v605, 1
    %vm625 = vcmp.lt.s32.totalorder %v605, 2
    %vm626 = vcmp.lt.s32.totalorder %v605, 3
    %vm627 = vcmp.lt.s32.totalorder %v605, 4
    %v628 = vsel %vm624, %v608, %v611
    %v629 = vsel %vm627, %v617, 2102212464
    %v630 = vsel %vm626, %v614, %v629
    %v631 = vsel %vm625, %v628, %v630
    %v632 = vsel %vm624, %v611, %v614
    %v633 = vsel %vm627, %v620, 920167782
    %v634 = vsel %vm626, %v617, %v633
    %v635 = vsel %vm625, %v632, %v634
    %v636 = vsel %vm624, %v614, %v617
    %v637 = vsel %vm627, %v623, 1326507024
    %v638 = vsel %vm626, %v620, %v637
    %v639 = vsel %vm625, %v636, %v638
    %v640 = vshll.u32 %v600, 8
    %v641 = vand.u32 %v640, 65535
    %v642 = vshrl.u32 %v640, 16
    %v643 = vand.u32 %v639, 65535
    %v644 = vshrl.u32 %v639, 16
    %v645 = vmul.u32 %v641, %v643
    %v646 = vmul.u32 %v641, %v644
    %v647 = vmul.u32 %v642, %v643
    %v648 = vmul.u32 %v642, %v644
    %v649 = vshll.u32 %v646, 16
    %v650 = vshrl.u32 %v646, 16
    %v651 = vshll.u32 %v647, 16
    %v652 = vshrl.u32 %v647, 16
    %vm653 = vc.u32 %v645, %v649
    %v654 = vsel %vm653, 1, 0
    %v655 = vadd.s32 %v645, %v649
    %v656 = vadd.s32 %v648, %v654
    %vm657 = vc.u32 %v655, %v651
    %v658 = vsel %vm657, 1, 0
    %v659 = vadd.s32 %v655, %v651
    %v660 = vadd.s32 %v656, %v658
    %v661 = vadd.s32 %v660, %v650
    %v662 = vadd.s32 %v661, %v652
    %v663 = vand.u32 %v640, 65535
    %v664 = vshrl.u32 %v640, 16
    %v665 = vand.u32 %v635, 65535
    %v666 = vshrl.u32 %v635, 16
    %v667 = vmul.u32 %v663, %v665
    %v668 = vmul.u32 %v663, %v666
    %v669 = vmul.u32 %v664, %v665
    %v670 = vmul.u32 %v664, %v666
    %v671 = vshll.u32 %v668, 16
    %v672 = vshrl.u32 %v668, 16
    %v673 = vshll.u32 %v669, 16
    %v674 = vshrl.u32 %v669, 16
    %vm675 = vc.u32 %v667, %v671
    %v676 = vsel %vm675, 1, 0
    %v677 = vadd.s32 %v667, %v671
    %v678 = vadd.s32 %v670, %v676
    %vm679 = vc.u32 %v677, %v673
    %v680 = vsel %vm679, 1, 0
    %v681 = vadd.s32 %v677, %v673
    %v682 = vadd.s32 %v678, %v680
    %v683 = vadd.s32 %v682, %v672
    %v684 = vadd.s32 %v683, %v674
    %v685 = vmul.u32 %v640, %v631
    %v686 = vadd.s32 %v662, %v681
    %vm687 = vc.u32 %v662, %v681
    %v688 = vadd.s32 %v684, 1
    %v689 = vsel %vm687, %v688, %v684
    %v690 = vadd.s32 %v685, %v689
    %v691 = vadd.s32 %v690, 536870912
    %v692 = vshrl.u32 %v691, 30
    %v693 = vshll.u32 %v692, 30
    %v694 = vsub.s32 %v690, %v693
    %vm695 = vcmp.lt.s32.totalorder %v694, 0
    %v696 = vsub.s32 0, %v694
    %v697 = vsel %vm695, %v696, %v694
    %v698 = vclz %v697
    %v699 = vsub.s32 %v698, 2
    %vm700 = vcmp.gt.s32.totalorder 0, %v699
    %v701 = vsel %vm700, 0, %v699
    %v702 = vsub.s32 32, %v701
    %v703 = vshll.u32 %v694, %v701
    %v704 = vshrl.u32 %v686, %v702
    %v705 = vor.u32 %v703, %v704
    %v706 = vsub.s32 4294967266, %v701
    %v707 = vadd.s32 %v706, 127
    %v708 = vshll.u32 %v707, 23
    %v709 = vor.u32 4788187, %v708
    %v710 = vand.u32 2147483647, %v709
    %v712 = vcvt.s32.f32 %v705
    %v713 = vmul.f32 %v712, %v710
    %v714 = vxor.u32 %v713, 2147483648
    %v715 = vsel %vm594, %v714, %v713
    %v716 = vsub.s32 4, %v692
    %v717 = vsel %vm594, %v716, %v692
    %v718 = vsel %vm593, %v77, %v715
    %v719 = vsel %vm593, 0, %v717
    %v720 = vmul.f32 %v718, %v718
    %v721 = vmul.f32 %v720, -0.001358992
    %v722 = vadd.f32 %v721, 0.041655596
    %v723 = vmul.f32 %v720, %v722
    %v724 = vadd.f32 %v723, -0.4999988
    %v725 = vmul.f32 %v720, %v724
    %v726 = vadd.f32 1.0, %v725
    %v727 = vmul.f32 %v718, %v718
    %v728 = vmul.f32 %v727, -0.00019511016
    %v729 = vadd.f32 %v728, 0.008332121
    %v730 = vmul.f32 %v727, %v729
    %v731 = vadd.f32 %v730, -0.16666654
    %v732 = vmul.f32 %v727, %v731
    %v733 = vadd.f32 %v732, 1.0
    %v734 = vmul.f32 %v733, %v718
    %vm735 = vweird.f32 %v77
    %v736 = vand.u32 %v719, 3
    %vm737 = vcmp.lt.s32.totalorder %v736, 2
    %vm738 = vcmp.eq.s32.totalorder %v736, 0
    %v739 = vxor.u32 %v734, 2147483648
    %v740 = vsel %vm738, %v726, %v739
    %vm741 = vcmp.eq.s32.totalorder %v736, 2
    %v742 = vxor.u32 %v726, 2147483648
    %v743 = vsel %vm741, %v742, %v734
    %v744 = vsel %vm737, %v740, %v743
    %v745 = vsel %vm735, nan, %v744
    %v746 = vand.u32 2147483647, %v74
    %vm747 = vcmp.le.f32.partialorder %v746, 0.7853982
    %vm748 = vcmp.lt.s32.totalorder %v74, 0
    %v749 = vand.u32 %v74, 2139095040
    %v750 = vshrl.u32 %v749, 23
    %v751 = vsub.s32 %v750, 127
    %v752 = vand.u32 2147483647, %v74
    %v753 = vand.u32 %v752, 8388607
    %v754 = vor.u32 %v753, 8388608
    %v755 = vsub.s32 0, %v754
    %v756 = vadd.s32 %v751, 1
    %vm757 = vcmp.gt.s32.totalorder %v756, 0
    %v758 = vsel %vm757, %v756, 0
    %v759 = vshrl.u32 %v758, 5
    %v760 = vand.u32 %v758, 31
    %v761 = vsub.s32 32, %v760
    %v762 = vshrl.u32 683565275, %v761
    %v763 = vshll.u32 683565275, %v760
    %v764 = vshrl.u32 2475754826, %v761
    %v765 = vor.u32 %v763, %v764
    %v766 = vshll.u32 2475754826, %v760
    %v767 = vshrl.u32 2131351028, %v761
    %v768 = vor.u32 %v766, %v767
    %v769 = vshll.u32 2131351028, %v760
    %v770 = vshrl.u32 2102212464, %v761
    %v771 = vor.u32 %v769, %v770
    %v772 = vshll.u32 2102212464, %v760
    %v773 = vshrl.u32 920167782, %v761
    %v774 = vor.u32 %v772, %v773
    %v775 = vshll.u32 920167782, %v760
    %v776 = vshrl.u32 1326507024, %v761
    %v777 = vor.u32 %v775, %v776
    %vm778 = vcmp.lt.s32.totalorder %v759, 1
    %vm779 = vcmp.lt.s32.totalorder %v759, 2
    %vm780 = vcmp.lt.s32.totalorder %v759, 3
    %vm781 = vcmp.lt.s32.totalorder %v759, 4
    %v782 = vsel %vm778, %v762, %v765
    %v783 = vsel %vm781, %v771, 2102212464
    %v784 = vsel %vm780, %v768, %v783
    %v785 = vsel %vm779, %v782, %v784
    %v786 = vsel %vm778, %v765, %v768
    %v787 = vsel %vm781, %v774, 920167782
    %v788 = vsel %vm780, %v771, %v787
    %v789 = vsel %vm779, %v786, %v788
    %v790 = vsel %vm778, %v768, %v771
    %v791 = vsel %vm781, %v777, 1326507024
    %v792 = vsel %vm780, %v774, %v791
    %v793 = vsel %vm779, %v790, %v792
    %v794 = vshll.u32 %v754, 8
    %v795 = vand.u32 %v794, 65535
    %v796 = vshrl.u32 %v794, 16
    %v797 = vand.u32 %v793, 65535
    %v798 = vshrl.u32 %v793, 16
    %v799 = vmul.u32 %v795, %v797
    %v800 = vmul.u32 %v795, %v798
    %v801 = vmul.u32 %v796, %v797
    %v802 = vmul.u32 %v796, %v798
    %v803 = vshll.u32 %v800, 16
    %v804 = vshrl.u32 %v800, 16
    %v805 = vshll.u32 %v801, 16
    %v806 = vshrl.u32 %v801, 16
    %vm807 = vc.u32 %v799, %v803
    %v808 = vsel %vm807, 1, 0
    %v809 = vadd.s32 %v799, %v803
    %v810 = vadd.s32 %v802, %v808
    %vm811 = vc.u32 %v809, %v805
    %v812 = vsel %vm811, 1, 0
    %v813 = vadd.s32 %v809, %v805
    %v814 = vadd.s32 %v810, %v812
    %v815 = vadd.s32 %v814, %v804
    %v816 = vadd.s32 %v815, %v806
    %v817 = vand.u32 %v794, 65535
    %v818 = vshrl.u32 %v794, 16
    %v819 = vand.u32 %v789, 65535
    %v820 = vshrl.u32 %v789, 16
    %v821 = vmul.u32 %v817, %v819
    %v822 = vmul.u32 %v817, %v820
    %v823 = vmul.u32 %v818, %v819
    %v824 = vmul.u32 %v818, %v820
    %v825 = vshll.u32 %v822, 16
    %v826 = vshrl.u32 %v822, 16
    %v827 = vshll.u32 %v823, 16
    %v828 = vshrl.u32 %v823, 16
    %vm829 = vc.u32 %v821, %v825
    %v830 = vsel %vm829, 1, 0
    %v831 = vadd.s32 %v821, %v825
    %v832 = vadd.s32 %v824, %v830
    %vm833 = vc.u32 %v831, %v827
    %v834 = vsel %vm833, 1, 0
    %v835 = vadd.s32 %v831, %v827
    %v836 = vadd.s32 %v832, %v834
    %v837 = vadd.s32 %v836, %v826
    %v838 = vadd.s32 %v837, %v828
    %v839 = vmul.u32 %v794, %v785
    %v840 = vadd.s32 %v816, %v835
    %vm841 = vc.u32 %v816, %v835
    %v842 = vadd.s32 %v838, 1
    %v843 = vsel %vm841, %v842, %v838
    %v844 = vadd.s32 %v839, %v843
    %v845 = vadd.s32 %v844, 536870912
    %v846 = vshrl.u32 %v845, 30
    %v847 = vshll.u32 %v846, 30
    %v848 = vsub.s32 %v844, %v847
    %vm849 = vcmp.lt.s32.totalorder %v848, 0
    %v850 = vsub.s32 0, %v848
    %v851 = vsel %vm849, %v850, %v848
    %v852 = vclz %v851
    %v853 = vsub.s32 %v852, 2
    %vm854 = vcmp.gt.s32.totalorder 0, %v853
    %v855 = vsel %vm854, 0, %v853
    %v856 = vsub.s32 32, %v855
    %v857 = vshll.u32 %v848, %v855
    %v858 = vshrl.u32 %v840, %v856
    %v859 = vor.u32 %v857, %v858
    %v860 = vsub.s32 4294967266, %v855
    %v861 = vadd.s32 %v860, 127
    %v862 = vshll.u32 %v861, 23
    %v863 = vor.u32 4788187, %v862
    %v864 = vand.u32 2147483647, %v863
    %v866 = vcvt.s32.f32 %v859
    %v867 = vmul.f32 %v866, %v864
    %v868 = vxor.u32 %v867, 2147483648
    %v869 = vsel %vm748, %v868, %v867
    %v870 = vsub.s32 4, %v846
    %v871 = vsel %vm748, %v870, %v846
    %v872 = vsel %vm747, %v74, %v869
    %v873 = vsel %vm747, 0, %v871
    %v874 = vmul.f32 %v872, %v872
    %v875 = vmul.f32 %v874, -0.001358992
    %v876 = vadd.f32 %v875, 0.041655596
    %v877 = vmul.f32 %v874, %v876
    %v878 = vadd.f32 %v877, -0.4999988
    %v879 = vmul.f32 %v874, %v878
    %v880 = vadd.f32 1.0, %v879
    %v881 = vmul.f32 %v872, %v872
    %v882 = vmul.f32 %v881, -0.00019511016
    %v883 = vadd.f32 %v882, 0.008332121
    %v884 = vmul.f32 %v881, %v883
    %v885 = vadd.f32 %v884, -0.16666654
    %v886 = vmul.f32 %v881, %v885
    %v887 = vadd.f32 %v886, 1.0
    %v888 = vmul.f32 %v887, %v872
    %vm889 = vweird.f32 %v74
    %v890 = vadd.s32 %v873, 3
    %v891 = vand.u32 %v890, 3
    %vm892 = vcmp.lt.s32.totalorder %v891, 2
    %vm893 = vcmp.eq.s32.totalorder %v891, 0
    %v894 = vxor.u32 %v888, 2147483648
    %v895 = vsel %vm893, %v880, %v894
    %vm896 = vcmp.eq.s32.totalorder %v891, 2
    %v897 = vxor.u32 %v880, 2147483648
    %v898 = vsel %vm896, %v897, %v888
    %v899 = vsel %vm892, %v895, %v898
    %v900 = vsel %vm889, nan, %v899
    %v901 = vand.u32 2147483647, %v75
    %vm902 = vcmp.le.f32.partialorder %v901, 0.7853982
    %vm903 = vcmp.lt.s32.totalorder %v75, 0
    %v904 = vand.u32 %v75, 2139095040
    %v905 = vshrl.u32 %v904, 23
    %v906 = vsub.s32 %v905, 127
    %v907 = vand.u32 2147483647, %v75
    %v908 = vand.u32 %v907, 8388607
    %v909 = vor.u32 %v908, 8388608
    %v910 = vsub.s32 0, %v909
    %v911 = vadd.s32 %v906, 1
    %vm912 = vcmp.gt.s32.totalorder %v911, 0
    %v913 = vsel %vm912, %v911, 0
    %v914 = vshrl.u32 %v913, 5
    %v915 = vand.u32 %v913, 31
    %v916 = vsub.s32 32, %v915
    %v917 = vshrl.u32 683565275, %v916
    %v918 = vshll.u32 683565275, %v915
    %v919 = vshrl.u32 2475754826, %v916
    %v920 = vor.u32 %v918, %v919
    %v921 = vshll.u32 2475754826, %v915
    %v922 = vshrl.u32 2131351028, %v916
    %v923 = vor.u32 %v921, %v922
    %v924 = vshll.u32 2131351028, %v915
    %v925 = vshrl.u32 2102212464, %v916
    %v926 = vor.u32 %v924, %v925
    %v927 = vshll.u32 2102212464, %v915
    %v928 = vshrl.u32 920167782, %v916
    %v929 = vor.u32 %v927, %v928
    %v930 = vshll.u32 920167782, %v915
    %v931 = vshrl.u32 1326507024, %v916
    %v932 = vor.u32 %v930, %v931
    %vm933 = vcmp.lt.s32.totalorder %v914, 1
    %vm934 = vcmp.lt.s32.totalorder %v914, 2
    %vm935 = vcmp.lt.s32.totalorder %v914, 3
    %vm936 = vcmp.lt.s32.totalorder %v914, 4
    %v937 = vsel %vm933, %v917, %v920
    %v938 = vsel %vm936, %v926, 2102212464
    %v939 = vsel %vm935, %v923, %v938
    %v940 = vsel %vm934, %v937, %v939
    %v941 = vsel %vm933, %v920, %v923
    %v942 = vsel %vm936, %v929, 920167782
    %v943 = vsel %vm935, %v926, %v942
    %v944 = vsel %vm934, %v941, %v943
    %v945 = vsel %vm933, %v923, %v926
    %v946 = vsel %vm936, %v932, 1326507024
    %v947 = vsel %vm935, %v929, %v946
    %v948 = vsel %vm934, %v945, %v947
    %v949 = vshll.u32 %v909, 8
    %v950 = vand.u32 %v949, 65535
    %v951 = vshrl.u32 %v949, 16
    %v952 = vand.u32 %v948, 65535
    %v953 = vshrl.u32 %v948, 16
    %v954 = vmul.u32 %v950, %v952
    %v955 = vmul.u32 %v950, %v953
    %v956 = vmul.u32 %v951, %v952
    %v957 = vmul.u32 %v951, %v953
    %v958 = vshll.u32 %v955, 16
    %v959 = vshrl.u32 %v955, 16
    %v960 = vshll.u32 %v956, 16
    %v961 = vshrl.u32 %v956, 16
    %vm962 = vc.u32 %v954, %v958
    %v963 = vsel %vm962, 1, 0
    %v964 = vadd.s32 %v954, %v958
    %v965 = vadd.s32 %v957, %v963
    %vm966 = vc.u32 %v964, %v960
    %v967 = vsel %vm966, 1, 0
    %v968 = vadd.s32 %v964, %v960
    %v969 = vadd.s32 %v965, %v967
    %v970 = vadd.s32 %v969, %v959
    %v971 = vadd.s32 %v970, %v961
    %v972 = vand.u32 %v949, 65535
    %v973 = vshrl.u32 %v949, 16
    %v974 = vand.u32 %v944, 65535
    %v975 = vshrl.u32 %v944, 16
    %v976 = vmul.u32 %v972, %v974
    %v977 = vmul.u32 %v972, %v975
    %v978 = vmul.u32 %v973, %v974
    %v979 = vmul.u32 %v973, %v975
    %v980 = vshll.u32 %v977, 16
    %v981 = vshrl.u32 %v977, 16
    %v982 = vshll.u32 %v978, 16
    %v983 = vshrl.u32 %v978, 16
    %vm984 = vc.u32 %v976, %v980
    %v985 = vsel %vm984, 1, 0
    %v986 = vadd.s32 %v976, %v980
    %v987 = vadd.s32 %v979, %v985
    %vm988 = vc.u32 %v986, %v982
    %v989 = vsel %vm988, 1, 0
    %v990 = vadd.s32 %v986, %v982
    %v991 = vadd.s32 %v987, %v989
    %v992 = vadd.s32 %v991, %v981
    %v993 = vadd.s32 %v992, %v983
    %v994 = vmul.u32 %v949, %v940
    %v995 = vadd.s32 %v971, %v990
    %vm996 = vc.u32 %v971, %v990
    %v997 = vadd.s32 %v993, 1
    %v998 = vsel %vm996, %v997, %v993
    %v999 = vadd.s32 %v994, %v998
    %v1000 = vadd.s32 %v999, 536870912
    %v1001 = vshrl.u32 %v1000, 30
    %v1002 = vshll.u32 %v1001, 30
    %v1003 = vsub.s32 %v999, %v1002
    %vm1004 = vcmp.lt.s32.totalorder %v1003, 0
    %v1005 = vsub.s32 0, %v1003
    %v1006 = vsel %vm1004, %v1005, %v1003
    %v1007 = vclz %v1006
    %v1008 = vsub.s32 %v1007, 2
    %vm1009 = vcmp.gt.s32.totalorder 0, %v1008
    %v1010 = vsel %vm1009, 0, %v1008
    %v1011 = vsub.s32 32, %v1010
    %v1012 = vshll.u32 %v1003, %v1010
    %v1013 = vshrl.u32 %v995, %v1011
    %v1014 = vor.u32 %v1012, %v1013
    %v1015 = vsub.s32 4294967266, %v1010
    %v1016 = vadd.s32 %v1015, 127
    %v1017 = vshll.u32 %v1016, 23
    %v1018 = vor.u32 4788187, %v1017
    %v1019 = vand.u32 2147483647, %v1018
    %v1021 = vcvt.s32.f32 %v1014
    %v1022 = vmul.f32 %v1021, %v1019
    %v1023 = vxor.u32 %v1022, 2147483648
    %v1024 = vsel %vm903, %v1023, %v1022
    %v1025 = vsub.s32 4, %v1001
    %v1026 = vsel %vm903, %v1025, %v1001
    %v1027 = vsel %vm902, %v75, %v1024
    %v1028 = vsel %vm902, 0, %v1026
    %v1029 = vmul.f32 %v1027, %v1027
    %v1030 = vmul.f32 %v1029, -0.001358992
    %v1031 = vadd.f32 %v1030, 0.041655596
    %v1032 = vmul.f32 %v1029, %v1031
    %v1033 = vadd.f32 %v1032, -0.4999988
    %v1034 = vmul.f32 %v1029, %v1033
    %v1035 = vadd.f32 1.0, %v1034
    %v1036 = vmul.f32 %v1027, %v1027
    %v1037 = vmul.f32 %v1036, -0.00019511016
    %v1038 = vadd.f32 %v1037, 0.008332121
    %v1039 = vmul.f32 %v1036, %v1038
    %v1040 = vadd.f32 %v1039, -0.16666654
    %v1041 = vmul.f32 %v1036, %v1040
    %v1042 = vadd.f32 %v1041, 1.0
    %v1043 = vmul.f32 %v1042, %v1027
    %vm1044 = vweird.f32 %v75
    %v1045 = vadd.s32 %v1028, 3
    %v1046 = vand.u32 %v1045, 3
    %vm1047 = vcmp.lt.s32.totalorder %v1046, 2
    %vm1048 = vcmp.eq.s32.totalorder %v1046, 0
    %v1049 = vxor.u32 %v1043, 2147483648
    %v1050 = vsel %vm1048, %v1035, %v1049
    %vm1051 = vcmp.eq.s32.totalorder %v1046, 2
    %v1052 = vxor.u32 %v1035, 2147483648
    %v1053 = vsel %vm1051, %v1052, %v1043
    %v1054 = vsel %vm1047, %v1050, %v1053
    %v1055 = vsel %vm1044, nan, %v1054
    %v1056 = vand.u32 2147483647, %v76
    %vm1057 = vcmp.le.f32.partialorder %v1056, 0.7853982
    %vm1058 = vcmp.lt.s32.totalorder %v76, 0
    %v1059 = vand.u32 %v76, 2139095040
    %v1060 = vshrl.u32 %v1059, 23
    %v1061 = vsub.s32 %v1060, 127
    %v1062 = vand.u32 2147483647, %v76
    %v1063 = vand.u32 %v1062, 8388607
    %v1064 = vor.u32 %v1063, 8388608
    %v1065 = vsub.s32 0, %v1064
    %v1066 = vadd.s32 %v1061, 1
    %vm1067 = vcmp.gt.s32.totalorder %v1066, 0
    %v1068 = vsel %vm1067, %v1066, 0
    %v1069 = vshrl.u32 %v1068, 5
    %v1070 = vand.u32 %v1068, 31
    %v1071 = vsub.s32 32, %v1070
    %v1072 = vshrl.u32 683565275, %v1071
    %v1073 = vshll.u32 683565275, %v1070
    %v1074 = vshrl.u32 2475754826, %v1071
    %v1075 = vor.u32 %v1073, %v1074
    %v1076 = vshll.u32 2475754826, %v1070
    %v1077 = vshrl.u32 2131351028, %v1071
    %v1078 = vor.u32 %v1076, %v1077
    %v1079 = vshll.u32 2131351028, %v1070
    %v1080 = vshrl.u32 2102212464, %v1071
    %v1081 = vor.u32 %v1079, %v1080
    %v1082 = vshll.u32 2102212464, %v1070
    %v1083 = vshrl.u32 920167782, %v1071
    %v1084 = vor.u32 %v1082, %v1083
    %v1085 = vshll.u32 920167782, %v1070
    %v1086 = vshrl.u32 1326507024, %v1071
    %v1087 = vor.u32 %v1085, %v1086
    %vm1088 = vcmp.lt.s32.totalorder %v1069, 1
    %vm1089 = vcmp.lt.s32.totalorder %v1069, 2
    %vm1090 = vcmp.lt.s32.totalorder %v1069, 3
    %vm1091 = vcmp.lt.s32.totalorder %v1069, 4
    %v1092 = vsel %vm1088, %v1072, %v1075
    %v1093 = vsel %vm1091, %v1081, 2102212464
    %v1094 = vsel %vm1090, %v1078, %v1093
    %v1095 = vsel %vm1089, %v1092, %v1094
    %v1096 = vsel %vm1088, %v1075, %v1078
    %v1097 = vsel %vm1091, %v1084, 920167782
    %v1098 = vsel %vm1090, %v1081, %v1097
    %v1099 = vsel %vm1089, %v1096, %v1098
    %v1100 = vsel %vm1088, %v1078, %v1081
    %v1101 = vsel %vm1091, %v1087, 1326507024
    %v1102 = vsel %vm1090, %v1084, %v1101
    %v1103 = vsel %vm1089, %v1100, %v1102
    %v1104 = vshll.u32 %v1064, 8
    %v1105 = vand.u32 %v1104, 65535
    %v1106 = vshrl.u32 %v1104, 16
    %v1107 = vand.u32 %v1103, 65535
    %v1108 = vshrl.u32 %v1103, 16
    %v1109 = vmul.u32 %v1105, %v1107
    %v1110 = vmul.u32 %v1105, %v1108
    %v1111 = vmul.u32 %v1106, %v1107
    %v1112 = vmul.u32 %v1106, %v1108
    %v1113 = vshll.u32 %v1110, 16
    %v1114 = vshrl.u32 %v1110, 16
    %v1115 = vshll.u32 %v1111, 16
    %v1116 = vshrl.u32 %v1111, 16
    %vm1117 = vc.u32 %v1109, %v1113
    %v1118 = vsel %vm1117, 1, 0
    %v1119 = vadd.s32 %v1109, %v1113
    %v1120 = vadd.s32 %v1112, %v1118
    %vm1121 = vc.u32 %v1119, %v1115
    %v1122 = vsel %vm1121, 1, 0
    %v1123 = vadd.s32 %v1119, %v1115
    %v1124 = vadd.s32 %v1120, %v1122
    %v1125 = vadd.s32 %v1124, %v1114
    %v1126 = vadd.s32 %v1125, %v1116
    %v1127 = vand.u32 %v1104, 65535
    %v1128 = vshrl.u32 %v1104, 16
    %v1129 = vand.u32 %v1099, 65535
    %v1130 = vshrl.u32 %v1099, 16
    %v1131 = vmul.u32 %v1127, %v1129
    %v1132 = vmul.u32 %v1127, %v1130
    %v1133 = vmul.u32 %v1128, %v1129
    %v1134 = vmul.u32 %v1128, %v1130
    %v1135 = vshll.u32 %v1132, 16
    %v1136 = vshrl.u32 %v1132, 16
    %v1137 = vshll.u32 %v1133, 16
    %v1138 = vshrl.u32 %v1133, 16
    %vm1139 = vc.u32 %v1131, %v1135
    %v1140 = vsel %vm1139, 1, 0
    %v1141 = vadd.s32 %v1131, %v1135
    %v1142 = vadd.s32 %v1134, %v1140
    %vm1143 = vc.u32 %v1141, %v1137
    %v1144 = vsel %vm1143, 1, 0
    %v1145 = vadd.s32 %v1141, %v1137
    %v1146 = vadd.s32 %v1142, %v1144
    %v1147 = vadd.s32 %v1146, %v1136
    %v1148 = vadd.s32 %v1147, %v1138
    %v1149 = vmul.u32 %v1104, %v1095
    %v1150 = vadd.s32 %v1126, %v1145
    %vm1151 = vc.u32 %v1126, %v1145
    %v1152 = vadd.s32 %v1148, 1
    %v1153 = vsel %vm1151, %v1152, %v1148
    %v1154 = vadd.s32 %v1149, %v1153
    %v1155 = vadd.s32 %v1154, 536870912
    %v1156 = vshrl.u32 %v1155, 30
    %v1157 = vshll.u32 %v1156, 30
    %v1158 = vsub.s32 %v1154, %v1157
    %vm1159 = vcmp.lt.s32.totalorder %v1158, 0
    %v1160 = vsub.s32 0, %v1158
    %v1161 = vsel %vm1159, %v1160, %v1158
    %v1162 = vclz %v1161
    %v1163 = vsub.s32 %v1162, 2
    %vm1164 = vcmp.gt.s32.totalorder 0, %v1163
    %v1165 = vsel %vm1164, 0, %v1163
    %v1166 = vsub.s32 32, %v1165
    %v1167 = vshll.u32 %v1158, %v1165
    %v1168 = vshrl.u32 %v1150, %v1166
    %v1169 = vor.u32 %v1167, %v1168
    %v1170 = vsub.s32 4294967266, %v1165
    %v1171 = vadd.s32 %v1170, 127
    %v1172 = vshll.u32 %v1171, 23
    %v1173 = vor.u32 4788187, %v1172
    %v1174 = vand.u32 2147483647, %v1173
    %v1176 = vcvt.s32.f32 %v1169
    %v1177 = vmul.f32 %v1176, %v1174
    %v1178 = vxor.u32 %v1177, 2147483648
    %v1179 = vsel %vm1058, %v1178, %v1177
    %v1180 = vsub.s32 4, %v1156
    %v1181 = vsel %vm1058, %v1180, %v1156
    %v1182 = vsel %vm1057, %v76, %v1179
    %v1183 = vsel %vm1057, 0, %v1181
    %v1184 = vmul.f32 %v1182, %v1182
    %v1185 = vmul.f32 %v1184, -0.001358992
    %v1186 = vadd.f32 %v1185, 0.041655596
    %v1187 = vmul.f32 %v1184, %v1186
    %v1188 = vadd.f32 %v1187, -0.4999988
    %v1189 = vmul.f32 %v1184, %v1188
    %v1190 = vadd.f32 1.0, %v1189
    %v1191 = vmul.f32 %v1182, %v1182
    %v1192 = vmul.f32 %v1191, -0.00019511016
    %v1193 = vadd.f32 %v1192, 0.008332121
    %v1194 = vmul.f32 %v1191, %v1193
    %v1195 = vadd.f32 %v1194, -0.16666654
    %v1196 = vmul.f32 %v1191, %v1195
    %v1197 = vadd.f32 %v1196, 1.0
    %v1198 = vmul.f32 %v1197, %v1182
    %vm1199 = vweird.f32 %v76
    %v1200 = vadd.s32 %v1183, 3
    %v1201 = vand.u32 %v1200, 3
    %vm1202 = vcmp.lt.s32.totalorder %v1201, 2
    %vm1203 = vcmp.eq.s32.totalorder %v1201, 0
    %v1204 = vxor.u32 %v1198, 2147483648
    %v1205 = vsel %vm1203, %v1190, %v1204
    %vm1206 = vcmp.eq.s32.totalorder %v1201, 2
    %v1207 = vxor.u32 %v1190, 2147483648
    %v1208 = vsel %vm1206, %v1207, %v1198
    %v1209 = vsel %vm1202, %v1205, %v1208
    %v1210 = vsel %vm1199, nan, %v1209
    %v1211 = vand.u32 2147483647, %v77
    %vm1212 = vcmp.le.f32.partialorder %v1211, 0.7853982
    %vm1213 = vcmp.lt.s32.totalorder %v77, 0
    %v1214 = vand.u32 %v77, 2139095040
    %v1215 = vshrl.u32 %v1214, 23
    %v1216 = vsub.s32 %v1215, 127
    %v1217 = vand.u32 2147483647, %v77
    %v1218 = vand.u32 %v1217, 8388607
    %v1219 = vor.u32 %v1218, 8388608
    %v1220 = vsub.s32 0, %v1219
    %v1221 = vadd.s32 %v1216, 1
    %vm1222 = vcmp.gt.s32.totalorder %v1221, 0
    %v1223 = vsel %vm1222, %v1221, 0
    %v1224 = vshrl.u32 %v1223, 5
    %v1225 = vand.u32 %v1223, 31
    %v1226 = vsub.s32 32, %v1225
    %v1227 = vshrl.u32 683565275, %v1226
    %v1228 = vshll.u32 683565275, %v1225
    %v1229 = vshrl.u32 2475754826, %v1226
    %v1230 = vor.u32 %v1228, %v1229
    %v1231 = vshll.u32 2475754826, %v1225
    %v1232 = vshrl.u32 2131351028, %v1226
    %v1233 = vor.u32 %v1231, %v1232
    %v1234 = vshll.u32 2131351028, %v1225
    %v1235 = vshrl.u32 2102212464, %v1226
    %v1236 = vor.u32 %v1234, %v1235
    %v1237 = vshll.u32 2102212464, %v1225
    %v1238 = vshrl.u32 920167782, %v1226
    %v1239 = vor.u32 %v1237, %v1238
    %v1240 = vshll.u32 920167782, %v1225
    %v1241 = vshrl.u32 1326507024, %v1226
    %v1242 = vor.u32 %v1240, %v1241
    %vm1243 = vcmp.lt.s32.totalorder %v1224, 1
    %vm1244 = vcmp.lt.s32.totalorder %v1224, 2
    %vm1245 = vcmp.lt.s32.totalorder %v1224, 3
    %vm1246 = vcmp.lt.s32.totalorder %v1224, 4
    %v1247 = vsel %vm1243, %v1227, %v1230
    %v1248 = vsel %vm1246, %v1236, 2102212464
    %v1249 = vsel %vm1245, %v1233, %v1248
    %v1250 = vsel %vm1244, %v1247, %v1249
    %v1251 = vsel %vm1243, %v1230, %v1233
    %v1252 = vsel %vm1246, %v1239, 920167782
    %v1253 = vsel %vm1245, %v1236, %v1252
    %v1254 = vsel %vm1244, %v1251, %v1253
    %v1255 = vsel %vm1243, %v1233, %v1236
    %v1256 = vsel %vm1246, %v1242, 1326507024
    %v1257 = vsel %vm1245, %v1239, %v1256
    %v1258 = vsel %vm1244, %v1255, %v1257
    %v1259 = vshll.u32 %v1219, 8
    %v1260 = vand.u32 %v1259, 65535
    %v1261 = vshrl.u32 %v1259, 16
    %v1262 = vand.u32 %v1258, 65535
    %v1263 = vshrl.u32 %v1258, 16
    %v1264 = vmul.u32 %v1260, %v1262
    %v1265 = vmul.u32 %v1260, %v1263
    %v1266 = vmul.u32 %v1261, %v1262
    %v1267 = vmul.u32 %v1261, %v1263
    %v1268 = vshll.u32 %v1265, 16
    %v1269 = vshrl.u32 %v1265, 16
    %v1270 = vshll.u32 %v1266, 16
    %v1271 = vshrl.u32 %v1266, 16
    %vm1272 = vc.u32 %v1264, %v1268
    %v1273 = vsel %vm1272, 1, 0
    %v1274 = vadd.s32 %v1264, %v1268
    %v1275 = vadd.s32 %v1267, %v1273
    %vm1276 = vc.u32 %v1274, %v1270
    %v1277 = vsel %vm1276, 1, 0
    %v1278 = vadd.s32 %v1274, %v1270
    %v1279 = vadd.s32 %v1275, %v1277
    %v1280 = vadd.s32 %v1279, %v1269
    %v1281 = vadd.s32 %v1280, %v1271
    %v1282 = vand.u32 %v1259, 65535
    %v1283 = vshrl.u32 %v1259, 16
    %v1284 = vand.u32 %v1254, 65535
    %v1285 = vshrl.u32 %v1254, 16
    %v1286 = vmul.u32 %v1282, %v1284
    %v1287 = vmul.u32 %v1282, %v1285
    %v1288 = vmul.u32 %v1283, %v1284
    %v1289 = vmul.u32 %v1283, %v1285
    %v1290 = vshll.u32 %v1287, 16
    %v1291 = vshrl.u32 %v1287, 16
    %v1292 = vshll.u32 %v1288, 16
    %v1293 = vshrl.u32 %v1288, 16
    %vm1294 = vc.u32 %v1286, %v1290
    %v1295 = vsel %vm1294, 1, 0
    %v1296 = vadd.s32 %v1286, %v1290
    %v1297 = vadd.s32 %v1289, %v1295
    %vm1298 = vc.u32 %v1296, %v1292
    %v1299 = vsel %vm1298, 1, 0
    %v1300 = vadd.s32 %v1296, %v1292
    %v1301 = vadd.s32 %v1297, %v1299
    %v1302 = vadd.s32 %v1301, %v1291
    %v1303 = vadd.s32 %v1302, %v1293
    %v1304 = vmul.u32 %v1259, %v1250
    %v1305 = vadd.s32 %v1281, %v1300
    %vm1306 = vc.u32 %v1281, %v1300
    %v1307 = vadd.s32 %v1303, 1
    %v1308 = vsel %vm1306, %v1307, %v1303
    %v1309 = vadd.s32 %v1304, %v1308
    %v1310 = vadd.s32 %v1309, 536870912
    %v1311 = vshrl.u32 %v1310, 30
    %v1312 = vshll.u32 %v1311, 30
    %v1313 = vsub.s32 %v1309, %v1312
    %vm1314 = vcmp.lt.s32.totalorder %v1313, 0
    %v1315 = vsub.s32 0, %v1313
    %v1316 = vsel %vm1314, %v1315, %v1313
    %v1317 = vclz %v1316
    %v1318 = vsub.s32 %v1317, 2
    %vm1319 = vcmp.gt.s32.totalorder 0, %v1318
    %v1320 = vsel %vm1319, 0, %v1318
    %v1321 = vsub.s32 32, %v1320
    %v1322 = vshll.u32 %v1313, %v1320
    %v1323 = vshrl.u32 %v1305, %v1321
    %v1324 = vor.u32 %v1322, %v1323
    %v1325 = vsub.s32 4294967266, %v1320
    %v1326 = vadd.s32 %v1325, 127
    %v1327 = vshll.u32 %v1326, 23
    %v1328 = vor.u32 4788187, %v1327
    %v1329 = vand.u32 2147483647, %v1328
    %v1331 = vcvt.s32.f32 %v1324
    %v1332 = vmul.f32 %v1331, %v1329
    %v1333 = vxor.u32 %v1332, 2147483648
    %v1334 = vsel %vm1213, %v1333, %v1332
    %v1335 = vsub.s32 4, %v1311
    %v1336 = vsel %vm1213, %v1335, %v1311
    %v1337 = vsel %vm1212, %v77, %v1334
    %v1338 = vsel %vm1212, 0, %v1336
    %v1339 = vmul.f32 %v1337, %v1337
    %v1340 = vmul.f32 %v1339, -0.001358992
    %v1341 = vadd.f32 %v1340, 0.041655596
    %v1342 = vmul.f32 %v1339, %v1341
    %v1343 = vadd.f32 %v1342, -0.4999988
    %v1344 = vmul.f32 %v1339, %v1343
    %v1345 = vadd.f32 1.0, %v1344
    %v1346 = vmul.f32 %v1337, %v1337
    %v1347 = vmul.f32 %v1346, -0.00019511016
    %v1348 = vadd.f32 %v1347, 0.008332121
    %v1349 = vmul.f32 %v1346, %v1348
    %v1350 = vadd.f32 %v1349, -0.16666654
    %v1351 = vmul.f32 %v1346, %v1350
    %v1352 = vadd.f32 %v1351, 1.0
    %v1353 = vmul.f32 %v1352, %v1337
    %vm1354 = vweird.f32 %v77
    %v1355 = vadd.s32 %v1338, 3
    %v1356 = vand.u32 %v1355, 3
    %vm1357 = vcmp.lt.s32.totalorder %v1356, 2
    %vm1358 = vcmp.eq.s32.totalorder %v1356, 0
    %v1359 = vxor.u32 %v1353, 2147483648
    %v1360 = vsel %vm1358, %v1345, %v1359
    %vm1361 = vcmp.eq.s32.totalorder %v1356, 2
    %v1362 = vxor.u32 %v1345, 2147483648
    %v1363 = vsel %vm1361, %v1362, %v1353
    %v1364 = vsel %vm1357, %v1360, %v1363
    %v1365 = vsel %vm1354, nan, %v1364
    %v1366 = vsel %vm126, %v283, %v900
    %v1367 = vsel %vm127, %v437, %v1055
    %v1368 = vsel %vm128, %v591, %v1210
    %v1369 = vsel %vm129, %v745, %v1365
    %1370 = vst [vmem:[#allocation7] sm:$0xff] %v1366
    %1371 = vst [vmem:[#allocation7 + $0x8] sm:$0xff] %v1367
    %1372 = vst [vmem:[#allocation7 + $0x10] sm:$0xff] %v1368
    %1373 = vst [vmem:[#allocation7 + $0x18] sm:$0xff] %v1369
    // Predicated region
    $region18: #{tpu_custom_call.1} parent=1 // pred_check
      _
    $region19: #{tpu_custom_call.1} parent=1 // pred_check_branch
      %1375 = sbr.rel (0) target = $region21
    $region20: #{tpu_custom_call.1} parent=1 // pred_region
      %1377 = vsyncadd [#allocation4], 0
      %s1379 = sshll.u32 [#allocation7], 4
      %s1380 = int_to_ptr.vmem [resolvable:$true] %s1379
      %s1381 = sshll.u32 %s2, 4
      %s1382 = int_to_ptr.hbm [resolvable:$true] %s1381
      %1384 = dma.vmem_to_hbm [thread:$0]  %s1380, 512, %s1382, [#allocation4]
    $region21: #{tpu_custom_call.1} parent=1 // pred_fallthru
      _
    // Predicated region
    $region22: #{tpu_custom_call.1} parent=1 // pred_check
      _
    $region23: #{tpu_custom_call.1} parent=1 // pred_check_branch
      %1386 = sbr.rel (0) target = $region25
    $region24: #{tpu_custom_call.1} parent=1 // pred_region
      %1388 = dma.done [#allocation4], 512
    $region25: #{tpu_custom_call.1} parent=1 // pred_fallthru
      _
    %1389 = vsyncpa [#allocation3], 1
    %1390 = vsyncpa [#allocation6], 1
    %1391 = vsyncpa [#allocation4], 1

</llo_original>
